<compile_context>
chip_gen: v7x
topology: tpu7x:2x2x1
jax: 0.10.0
libtpu: 0.0.40
codegen_flags: <defaults>
</compile_context>

<pallas_src>
import jax
import jax.numpy as jnp
from jax.experimental import pallas as pl
from jax.experimental.pallas import tpu as pltpu

_LANE = 128


def _copy_kernel(x_ref, o_ref):
    # Hot path: straight VMEM load + store of the current tile.
    o_ref[...] = x_ref[...]


def _generation_params():
    """Per-TPU-generation (tile_bytes_target, vmem_limit_bytes)."""
    try:
        kind = jax.devices()[0].device_kind.lower()
    except Exception:
        kind = ""
    if "v7" in kind:
        # 64 MiB physical VMEM, ~3.2 TB/s HBM: 8 MiB tiles keep the ~0.35 us
        # per-step overhead <10%; resident 8 MiB * 2 arrays * 2 bufs = 32 MiB.
        return 8 * 1024 * 1024, 48 * 1024 * 1024
    if "v6" in kind:
        # 128 MiB physical VMEM, ~1.4 TB/s HBM.
        return 8 * 1024 * 1024, 48 * 1024 * 1024
    if "v5" in kind:
        # 16 MiB scoped default; raise explicitly so 4 MiB tiles fit.
        return 4 * 1024 * 1024, 32 * 1024 * 1024
    # Unknown / CPU-interpret etc: conservative, stay under any default.
    return 2 * 1024 * 1024, None


def _sublane_multiple(dtype):
    """Rows-per-tile multiple so packed dtypes keep legal, relayout-free tiles."""
    dt = jnp.dtype(dtype)
    name = dt.name
    if "int4" in name or "uint4" in name or "float4" in name:
        # TODO(synk): sub-byte dtypes are not perf-tuned; 64 is the safe multiple.
        return 64
    bits = dt.itemsize * 8
    return {32: 8, 16: 16, 8: 32}.get(bits, 64)


def graph_learning_forward(x):
    """Pallas equivalent of GraphLearningModule.forward (a no-op / identity)."""
    orig_shape = x.shape
    total = x.size
    if total == 0:
        return x

    itemsize = jnp.dtype(x.dtype).itemsize
    cost = pl.CostEstimate(flops=0, transcendentals=0,
                           bytes_accessed=2 * total * itemsize)

    # Lane-dense layout: pad the flat array to a multiple of 128 so the last
    # dim is exactly one vreg of lanes (full-width vst, no masked stores),
    # then slice the tail off afterwards.
    pad = (-total) % _LANE
    xf = x.reshape(total)
    if pad:
        xf = jnp.pad(xf, (0, pad))
    rows = (total + pad) // _LANE
    x2 = xf.reshape(rows, _LANE)

    tile_bytes, vmem_limit = _generation_params()
    sub = _sublane_multiple(x.dtype)
    tm_target = max(sub, tile_bytes // (_LANE * itemsize))

    if rows <= tm_target:
        # Tiny input: single full-extent block (always a legal block shape),
        # no grid / pipeline — launch overhead already dwarfs the traffic.
        out2 = pl.pallas_call(
            _copy_kernel,
            out_shape=jax.ShapeDtypeStruct((rows, _LANE), x.dtype),
            in_specs=[pl.BlockSpec((rows, _LANE), lambda: (0, 0))],
            out_specs=pl.BlockSpec((rows, _LANE), lambda: (0, 0)),
            input_output_aliases={0: 0},
            cost_estimate=cost,
        )(x2)
    else:
        tm = (tm_target // sub) * sub
        grid = (pl.cdiv(rows, tm),)
        cp_kwargs = dict(dimension_semantics=("parallel",))
        if vmem_limit is not None:
            cp_kwargs["vmem_limit_bytes"] = vmem_limit
        out2 = pl.pallas_call(
            _copy_kernel,
            out_shape=jax.ShapeDtypeStruct((rows, _LANE), x.dtype),
            grid=grid,
            in_specs=[pl.BlockSpec((tm, _LANE), lambda i: (i, 0))],
            out_specs=pl.BlockSpec((tm, _LANE), lambda i: (i, 0)),
            input_output_aliases={0: 0},
            compiler_params=pltpu.CompilerParams(**cp_kwargs),
            cost_estimate=cost,
        )(x2)

    out = out2.reshape(rows * _LANE)
    if pad:
        out = out[:total]
    return out.reshape(orig_shape)


if __name__ == "__main__":
    key = jax.random.PRNGKey(0)
    # Small NCHW input consistent with a conv-style graph-learning module.
    x = jax.random.normal(key, (2, 4, 16, 16), dtype=jnp.float32)

    y = graph_learning_forward(x)
    y = jax.block_until_ready(y)

    # Identity semantics check (the module performs no computation).
    assert y.shape == x.shape and y.dtype == x.dtype
    assert bool(jnp.allclose(y, x))

    print("KERNEL_OK")
</pallas_src>

<mosaic_0001>
module attributes {stable_mosaic.version = 11 : i64} {
  func.func @_copy_kernel(%arg0: memref<16x128xf32, #tpu.memory_space<vmem>>, %arg1: memref<16x128xf32, #tpu.memory_space<vmem>>) attributes {dimension_semantics = [], scalar_prefetch = 0 : i64, scratch_operands = 0 : i64, tpu.core_type = #tpu.core_type<tc>} {
    %c0 = arith.constant 0 : index
    %c0_0 = arith.constant 0 : index
    %0 = vector.load %arg0[%c0, %c0_0] : memref<16x128xf32, #tpu.memory_space<vmem>>, vector<16x128xf32>
    %c0_1 = arith.constant 0 : index
    %c0_2 = arith.constant 0 : index
    %1 = vector.load %arg1[%c0_1, %c0_2] : memref<16x128xf32, #tpu.memory_space<vmem>>, vector<16x128xf32>
    tpu.vector_store %arg1[%c0_1, %c0_2], %0 {strides = array<i32>} : memref<16x128xf32, #tpu.memory_space<vmem>>, vector<16x128xf32>,
    return
  }
}

</mosaic_0001>

<llo_original>
// kernel: tpu_custom_call.1
$region0: #{tpu_custom_call.1}
  #allocation0 [shape = 'u32[]', space=smem, size = 0x4, offset = 0x4, fixed_abs, tag = 'smem constant byte address 0x4 - core index']
  #allocation1 [shape = 'u32[144,128]{1,0:T(1,128)}', space=vmem, size = 0x12000, scoped, tag = 'internal scratch']
  %s0 = inlined_call_operand.hbm [shape: f32[16,128], index: 0, kind: input, shape index: {}, may-alias: {0,1}]
  %s1 = inlined_call_operand.hbm [shape: f32[16,128], index: 1, kind: output, shape index: {}, may-alias: {0,1}]
  %s2 = sld [smem:[#allocation0]]
  $region18: #{tpu_custom_call.1} parent=0
    _
  %s4 = ssub.s32 1, %s2
  %s5 = scalar_select 0, %s4, %s2
  $region1: #{tpu_custom_call.1} parent=0
    #allocation2 [shape = 'u8[8192]{0}', space=vmem, size = 0x2000, scoped, tag = 'input window, operand 0, single buffered']
    #allocation3 [shape = 's32[1]{0}', space=sflag, size = 0x4, scoped, tag = 'scoped memory for tpu_custom_call.1']
    #allocation4 [shape = 's32[1]{0}', space=sflag, size = 0x4, scoped, tag = 'scoped memory for tpu_custom_call.1']
    #allocation5 [shape = 'u8[8192]{0}', space=vmem, size = 0x2000, scoped, tag = 'output window, operand 0, single buffered']
    %6 = vsyncpa [#allocation3], 0
    %7 = vsyncpa [#allocation4], 0
    // Predicated region
    $region2: #{tpu_custom_call.1} parent=1 // pred_check
      _
    $region3: #{tpu_custom_call.1} parent=1 // pred_check_branch
      %9 = sbr.rel (0) target = $region5
    $region4: #{tpu_custom_call.1} parent=1 // pred_region
      %s11 = ssub.s32 256, 256
      %12 = vsyncadd [#allocation3], %s11
      %s13 = sshll.u32 [#allocation2], 4
      %s14 = int_to_ptr.vmem [resolvable:$true] %s13
      %19 = dma.hbm_to_vmem [thread:$0]  %s0, 256, %s14, [#allocation3], 128, 128, 8
    $region5: #{tpu_custom_call.1} parent=1 // pred_fallthru
      _
    // Predicated region
    $region6: #{tpu_custom_call.1} parent=1 // pred_check
      _
    $region7: #{tpu_custom_call.1} parent=1 // pred_check_branch
      %21 = sbr.rel (0) target = $region9
    $region8: #{tpu_custom_call.1} parent=1 // pred_region
      %22 = dma.done [#allocation3], 256
    $region9: #{tpu_custom_call.1} parent=1 // pred_fallthru
      _
    %v23 = vld [vmem:[#allocation2] sm:$0xff]
    %v24 = vld [vmem:[#allocation2 + $0x8] sm:$0xff]
    %25 = vst [vmem:[#allocation5] sm:$0xff] %v23
    %26 = vst [vmem:[#allocation5 + $0x8] sm:$0xff] %v24
    // Predicated region
    $region10: #{tpu_custom_call.1} parent=1 // pred_check
      _
    $region11: #{tpu_custom_call.1} parent=1 // pred_check_branch
      %28 = sbr.rel (0) target = $region13
    $region12: #{tpu_custom_call.1} parent=1 // pred_region
      %s30 = ssub.s32 256, 256
      %31 = vsyncadd [#allocation4], %s30
      %s32 = sshll.u32 [#allocation5], 4
      %s33 = int_to_ptr.vmem [resolvable:$true] %s32
      %38 = dma.vmem_to_hbm [thread:$0]  %s33, 256, %s1, [#allocation4], 128, 128, 8
    $region13: #{tpu_custom_call.1} parent=1 // pred_fallthru
      _
    // Predicated region
    $region14: #{tpu_custom_call.1} parent=1 // pred_check
      _
    $region15: #{tpu_custom_call.1} parent=1 // pred_check_branch
      %40 = sbr.rel (0) target = $region17
    $region16: #{tpu_custom_call.1} parent=1 // pred_region
      %41 = dma.done [#allocation4], 256
    $region17: #{tpu_custom_call.1} parent=1 // pred_fallthru
      _
    %42 = vsyncpa [#allocation3], 1
    %43 = vsyncpa [#allocation4], 1

</llo_original>
